<compile_context>
chip_gen: v7x
topology: tpu7x:2x2x1
jax: 0.10.0
libtpu: 0.0.40
codegen_flags: <defaults>
</compile_context>

<pallas_src>
import math
import functools

import jax
import jax.numpy as jnp
import numpy as np
from jax import lax
from jax.experimental import pallas as pl
from jax.experimental.pallas import tpu as pltpu

_MIB = 1024 * 1024


# ---------------------------------------------------------------- helpers

def _cdiv(a, b):
    return -(-a // b)


def _round_up(x, m):
    return _cdiv(x, m) * m


def _sublane_mult(dtype):
    # sublane packing: 4B -> 8, 2B -> 16, 1B -> 32 (keeps output stores dense)
    itemsize = jnp.dtype(dtype).itemsize
    return max(8, 32 // itemsize)


def _vmem_capacity_bytes():
    try:
        info = pltpu.get_tpu_info()
        cap = int(getattr(info, "vmem_capacity_bytes", 0) or 0)
        if cap > 0:
            return cap
    except Exception:
        pass
    return 64 * _MIB  # conservative default (v7x per-core VMEM)


def _pick_tile(dim, t_max, mult):
    """Near-even tile <= t_max, multiple of `mult`, minimizing padding of `dim`."""
    dpad = _round_up(max(dim, 1), mult)
    t_max = max(mult, _round_up(min(t_max, dpad), mult))
    n = _cdiv(dpad, t_max)
    return _round_up(_cdiv(dpad, n), mult)


# ---------------------------------------------------------------- kernels

def _slinear_resident_kernel(x_ref, w_ref, b_ref, o_ref, *, scale):
    # x_ref: (tm, K)  w_ref: (N, K)  b_ref: (1, N)  o_ref: (tm, N)
    # Single pass: weight is VMEM-resident across the whole M grid axis.
    acc = lax.dot_general(
        x_ref[...], w_ref[...],
        dimension_numbers=(((1,), (1,)), ((), ())),   # contract last dims (trans-B)
        preferred_element_type=jnp.float32)
    o_ref[...] = (acc * scale + b_ref[...]).astype(o_ref.dtype)


def _slinear_tiled_kernel(x_ref, w_ref, b_ref, o_ref, acc_ref, *, scale):
    # x_ref: (tm, tk)  w_ref: (tn, tk)  b_ref: (1, tn)  o_ref/acc_ref: (tm, tn)
    @pl.when(pl.program_id(2) == 0)
    def _():
        acc_ref[...] = jnp.zeros_like(acc_ref)

    acc_ref[...] += lax.dot_general(
        x_ref[...], w_ref[...],
        dimension_numbers=(((1,), (1,)), ((), ())),
        preferred_element_type=jnp.float32)

    @pl.when(pl.program_id(2) == pl.num_programs(2) - 1)
    def _():
        # ScaleW runtime scaling + bias, fused into the finalize store.
        o_ref[...] = (acc_ref[...] * scale + b_ref[...]).astype(o_ref.dtype)


# ---------------------------------------------------------------- wrapper

def slinear_forward(x, weight, bias, *, tm_max=None, tn_max=512, tk_max=1024,
                    force_tiled=False):
    """Pallas SLinear forward.

    x:      (..., dim_in)
    weight: (dim_out, dim_in)   raw (unscaled) weight, as stored by SLinear
    bias:   (dim_out,)
    returns (..., dim_out) = x @ (weight * sqrt(2/dim_in)).T + bias
    """
    out_dtype = x.dtype
    *lead, K = x.shape
    N, K2 = weight.shape
    assert K == K2, "dim_in mismatch"
    M = int(np.prod(lead)) if lead else 1
    scale = math.sqrt(2.0 / K)  # fan_in = dim_in (weight.size(1) * 1)

    x2 = x.reshape(M, K)
    b2 = bias.reshape(1, N)

    in_item = jnp.dtype(x.dtype).itemsize
    w_item = jnp.dtype(weight.dtype).itemsize
    out_item = jnp.dtype(out_dtype).itemsize
    sub = _sublane_mult(out_dtype)

    cap = _vmem_capacity_bytes()
    usable = max(32 * _MIB, min(cap - 16 * _MIB, 100 * _MIB))
    if tm_max is None:
        # v5e/v6e (128 MiB VMEM) can afford bigger M tiles than v7x (64 MiB).
        tm_max = 512 if cap >= 100 * _MIB else 256

    cost = pl.CostEstimate(
        flops=2 * M * N * K,
        transcendentals=0,
        bytes_accessed=M * K * in_item + N * K * w_item + N * 4 + M * N * out_item)

    # ------------------- Path A: weight-resident single pass -------------------
    tm = _pick_tile(M, tm_max, sub)
    fp_single = (2 * tm * K * in_item + 2 * N * K * w_item + 2 * N * 4
                 + 2 * tm * N * out_item)
    if not force_tiled and fp_single <= min(usable, 48 * _MIB):
        Mp = _round_up(M, tm)
        if Mp != M:
            x2 = jnp.pad(x2, ((0, Mp - M), (0, 0)))
        out = pl.pallas_call(
            functools.partial(_slinear_resident_kernel, scale=scale),
            out_shape=jax.ShapeDtypeStruct((Mp, N), out_dtype),
            grid_spec=pltpu.PrefetchScalarGridSpec(
                num_scalar_prefetch=0,
                grid=(Mp // tm,),
                in_specs=[
                    pl.BlockSpec((tm, K), lambda i: (i, 0)),   # x tile streams over M
                    pl.BlockSpec((N, K), lambda i: (0, 0)),    # full weight, DMA'd once
                    pl.BlockSpec((1, N), lambda i: (0, 0)),    # full bias
                ],
                out_specs=pl.BlockSpec((tm, N), lambda i: (i, 0)),
            ),
            compiler_params=pltpu.CompilerParams(
                dimension_semantics=("parallel",),
                vmem_limit_bytes=int(min(usable, max(32 * _MIB, int(fp_single * 1.5)))),
            ),
            cost_estimate=cost,
        )(x2, weight, b2)
        if Mp != M:
            out = out[:M]
        return out.reshape(*lead, N)

    # ------------------- Path B: tiled K-reduction matmul -------------------
    tm = _pick_tile(M, tm_max, sub)
    tn = _pick_tile(N, tn_max, 128)
    tk = _pick_tile(K, tk_max, 128)
    Mp, Np, Kp = _round_up(M, tm), _round_up(N, tn), _round_up(K, tk)

    w2 = weight
    if (Mp, Kp) != (M, K):
        x2 = jnp.pad(x2, ((0, Mp - M), (0, Kp - K)))
    if (Np, Kp) != (N, K):
        w2 = jnp.pad(weight, ((0, Np - N), (0, Kp - K)))
    if Np != N:
        b2 = jnp.pad(b2, ((0, 0), (0, Np - N)))

    fp_tiled = (2 * tm * tk * in_item + 2 * tn * tk * w_item + 2 * tn * 4
                + tm * tn * 4 + 2 * tm * tn * out_item)

    out = pl.pallas_call(
        functools.partial(_slinear_tiled_kernel, scale=scale),
        out_shape=jax.ShapeDtypeStruct((Mp, Np), out_dtype),
        grid_spec=pltpu.PrefetchScalarGridSpec(
            num_scalar_prefetch=0,
            grid=(Mp // tm, Np // tn, Kp // tk),
            in_specs=[
                pl.BlockSpec((tm, tk), lambda i, j, k: (i, k)),
                pl.BlockSpec((tn, tk), lambda i, j, k: (j, k)),   # weight kept (N, K)
                pl.BlockSpec((1, tn), lambda i, j, k: (0, j)),
            ],
            out_specs=pl.BlockSpec((tm, tn), lambda i, j, k: (i, j)),
            scratch_shapes=[pltpu.VMEM((tm, tn), jnp.float32)],
        ),
        compiler_params=pltpu.CompilerParams(
            dimension_semantics=("parallel", "parallel", "arbitrary"),
            vmem_limit_bytes=int(min(usable, max(32 * _MIB, int(fp_tiled * 1.5)))),
        ),
        cost_estimate=cost,
    )(x2, w2, b2)

    out = out[:M, :N]
    return out.reshape(*lead, N)


# ---------------------------------------------------------------- pure-JAX reference

def reference_forward(x, weight, bias):
    scale = math.sqrt(2.0 / weight.shape[1])
    return jnp.matmul(x, (weight * scale).T) + bias


# ---------------------------------------------------------------- module setup / test

def init_params(key, dim_in, dim_out):
    kw, _ = jax.random.split(key)
    weight = jax.random.normal(kw, (dim_out, dim_in), jnp.float32)  # .normal_()
    bias = jnp.zeros((dim_out,), jnp.float32)                       # .zero_()
    return dict(weight=weight, bias=bias)


if __name__ == "__main__":
    key = jax.random.PRNGKey(0)

    # Case 1: typical small SLinear call (weight-resident single-pass path).
    B, S, DIM_IN, DIM_OUT = 2, 8, 32, 64
    k1, k2, key = jax.random.split(key, 3)
    x = jax.random.normal(k1, (B, S, DIM_IN), jnp.float32)
    params = init_params(k2, DIM_IN, DIM_OUT)
    out = jax.block_until_ready(
        slinear_forward(x, params["weight"], params["bias"]))
    assert out.shape == (B, S, DIM_OUT)
    ref = jax.block_until_ready(
        reference_forward(x, params["weight"], params["bias"]))
    np.testing.assert_allclose(np.asarray(out), np.asarray(ref),
                               rtol=1e-5, atol=1e-5)

    # Case 2: dims not multiples of 8/128 (exercises full-dim blocks + M padding).
    k1, k2, key = jax.random.split(key, 3)
    x2 = jax.random.normal(k1, (3, 5, 40), jnp.float32)
    p2 = init_params(k2, 40, 72)
    out2 = jax.block_until_ready(
        slinear_forward(x2, p2["weight"], p2["bias"]))
    ref2 = reference_forward(x2, p2["weight"], p2["bias"])
    np.testing.assert_allclose(np.asarray(out2), np.asarray(ref2),
                               rtol=1e-5, atol=1e-5)

    # Case 3: force the tiled K-reduction path at small shapes.
    k1, k2, key = jax.random.split(key, 3)
    x3 = jax.random.normal(k1, (6, 8, 256), jnp.float32)
    p3 = init_params(k2, 256, 384)
    out3 = jax.block_until_ready(
        slinear_forward(x3, p3["weight"], p3["bias"],
                        force_tiled=True, tm_max=32, tn_max=128, tk_max=128))
    ref3 = reference_forward(x3, p3["weight"], p3["bias"])
    np.testing.assert_allclose(np.asarray(out3), np.asarray(ref3),
                               rtol=5e-3, atol=5e-3)

    print("KERNEL_OK")
</pallas_src>

<mosaic_0001>
module attributes {stable_mosaic.version = 11 : i64} {
  func.func @_slinear_resident_kernel(%arg0: i32, %arg1: memref<16x32xf32, #tpu.memory_space<vmem>>, %arg2: memref<64x32xf32, #tpu.memory_space<vmem>>, %arg3: memref<1x64xf32, #tpu.memory_space<vmem>>, %arg4: memref<16x64xf32, #tpu.memory_space<vmem>>) attributes {dimension_semantics = [#tpu.dimension_semantics<parallel>], iteration_bounds = array<i64: 1>, scalar_prefetch = 0 : i64, scratch_operands = 0 : i64, tpu.core_type = #tpu.core_type<tc>, window_params = [{transform_indices = @transform_0, window_bounds = array<i64: 16, 32>}, {pipeline_mode = #tpu.pipeline_mode<synchronous>, transform_indices = @transform_1, window_bounds = array<i64: 64, 32>}, {pipeline_mode = #tpu.pipeline_mode<synchronous>, transform_indices = @transform_2, window_bounds = array<i64: 1, 64>}, {transform_indices = @transform_3, window_bounds = array<i64: 16, 64>}]} {
    %c0 = arith.constant 0 : index
    %c0_0 = arith.constant 0 : index
    %0 = vector.load %arg1[%c0, %c0_0] : memref<16x32xf32, #tpu.memory_space<vmem>>, vector<16x32xf32>
    %c0_1 = arith.constant 0 : index
    %c0_2 = arith.constant 0 : index
    %1 = vector.load %arg2[%c0_1, %c0_2] : memref<64x32xf32, #tpu.memory_space<vmem>>, vector<64x32xf32>
    %cst = arith.constant dense<0.000000e+00> : vector<16x64xf32>
    %2 = tpu.matmul %0, %1, %cst {dimension_numbers = #tpu.dot_dimension_numbers<[1], [1], [0], [0], [0, 0, 1, 0], [], []>} : vector<16x32xf32>, vector<64x32xf32>, vector<16x64xf32> -> vector<16x64xf32>
    %cst_3 = arith.constant 2.500000e-01 : f32
    %3 = vector.broadcast %cst_3 : f32 to vector<16x64xf32>
    %4 = arith.mulf %2, %3 : vector<16x64xf32>
    %c0_4 = arith.constant 0 : index
    %c0_5 = arith.constant 0 : index
    %5 = vector.load %arg3[%c0_4, %c0_5] : memref<1x64xf32, #tpu.memory_space<vmem>>, vector<1x64xf32>
    %6 = vector.broadcast %5 : vector<1x64xf32> to vector<16x64xf32>
    %7 = arith.addf %4, %6 : vector<16x64xf32>
    %c0_6 = arith.constant 0 : index
    %c0_7 = arith.constant 0 : index
    %8 = vector.load %arg4[%c0_6, %c0_7] : memref<16x64xf32, #tpu.memory_space<vmem>>, vector<16x64xf32>
    tpu.vector_store %arg4[%c0_6, %c0_7], %7 {strides = array<i32>} : memref<16x64xf32, #tpu.memory_space<vmem>>, vector<16x64xf32>,
    return
  }
  func.func @transform_0(%arg0: i32) -> (i32, i32) {
    %c0_i32 = arith.constant 0 : i32
    %c0_i32_0 = arith.constant 0 : i32
    return %arg0, %c0_i32 : i32, i32
  }
  func.func @transform_1(%arg0: i32) -> (i32, i32) {
    %c0_i32 = arith.constant 0 : i32
    %c0_i32_0 = arith.constant 0 : i32
    %c0_i32_1 = arith.constant 0 : i32
    return %c0_i32, %c0_i32_0 : i32, i32
  }
  func.func @transform_2(%arg0: i32) -> (i32, i32) {
    %c0_i32 = arith.constant 0 : i32
    %c0_i32_0 = arith.constant 0 : i32
    %c0_i32_1 = arith.constant 0 : i32
    return %c0_i32, %c0_i32_0 : i32, i32
  }
  func.func @transform_3(%arg0: i32) -> (i32, i32) {
    %c0_i32 = arith.constant 0 : i32
    %c0_i32_0 = arith.constant 0 : i32
    return %arg0, %c0_i32 : i32, i32
  }
}

</mosaic_0001>

<llo_original>
// kernel: tpu_custom_call.1
$region0: #{tpu_custom_call.1}
  #allocation0 [shape = 'u32[]', space=smem, size = 0x4, offset = 0x4, fixed_abs, tag = 'smem constant byte address 0x4 - core index']
  #allocation1 [shape = 'u32[144,128]{1,0:T(1,128)}', space=vmem, size = 0x12000, scoped, tag = 'internal scratch']
  %s0 = inlined_call_operand.vmem [shape: f32[16,32], index: 0, kind: input, shape index: {}]
  %s1 = inlined_call_operand.vmem [shape: f32[64,32], index: 1, kind: input, shape index: {}]
  %s2 = inlined_call_operand.vmem [shape: f32[1,64], index: 2, kind: input, shape index: {}]
  %s3 = inlined_call_operand.hbm [shape: f32[16,64], index: 3, kind: output, shape index: {}]
  %s4 = sld [smem:[#allocation0]]
  $region22: #{tpu_custom_call.1} parent=0
    _
  %s6 = ssub.s32 1, %s4
  %s7 = scalar_select 0, %s6, %s4
  $region1: #{tpu_custom_call.1} parent=0
    #allocation2 [shape = 'u8[8192]{0}', space=vmem, size = 0x2000, scoped, tag = 'output window, operand 0, single buffered']
    #allocation3 [shape = 's32[1]{0}', space=sflag, size = 0x4, scoped, tag = 'scoped memory for tpu_custom_call.1']
    %8 = vsyncpa [#allocation3], 0
    // Predicated region
    $region2: #{tpu_custom_call.1} parent=1 // pred_check
      _
    $region3: #{tpu_custom_call.1} parent=1 // pred_check_branch
      %10 = sbr.rel (0) target = $region5
    $region4: #{tpu_custom_call.1} parent=1 // pred_region
      _
    $region5: #{tpu_custom_call.1} parent=1 // pred_fallthru
      _
    // Predicated region
    $region6: #{tpu_custom_call.1} parent=1 // pred_check
      _
    $region7: #{tpu_custom_call.1} parent=1 // pred_check_branch
      %12 = sbr.rel (0) target = $region9
    $region8: #{tpu_custom_call.1} parent=1 // pred_region
      _
    $region9: #{tpu_custom_call.1} parent=1 // pred_fallthru
      _
    // Predicated region
    $region10: #{tpu_custom_call.1} parent=1 // pred_check
      _
    $region11: #{tpu_custom_call.1} parent=1 // pred_check_branch
      %14 = sbr.rel (0) target = $region13
    $region12: #{tpu_custom_call.1} parent=1 // pred_region
      _
    $region13: #{tpu_custom_call.1} parent=1 // pred_fallthru
      _
    %v15 = vld [vmem:[%s0] sm:$0xff]
    %v16 = vld [vmem:[%s0 + $0x8] sm:$0xff]
    %v17 = vld [vmem:[%s1] sm:$0xff]
    %v18 = vld [vmem:[%s1 + $0x8] sm:$0xff]
    %v19 = vld [vmem:[%s1 + $0x10] sm:$0xff]
    %v20 = vld [vmem:[%s1 + $0x18] sm:$0xff]
    %v21 = vld [vmem:[%s1 + $0x20] sm:$0xff]
    %v22 = vld [vmem:[%s1 + $0x28] sm:$0xff]
    %v23 = vld [vmem:[%s1 + $0x30] sm:$0xff]
    %v24 = vld [vmem:[%s1 + $0x38] sm:$0xff]
    %vm25 = vcmask 261120
    %v27 = vsel %vm25, %v15, 0
    %v30 = vsel %vm25, %v16, 0
    %v33 = vsel %vm25, %v17, 0
    %v36 = vsel %vm25, %v18, 0
    %v39 = vsel %vm25, %v19, 0
    %v42 = vsel %vm25, %v20, 0
    %v45 = vsel %vm25, %v21, 0
    %v48 = vsel %vm25, %v22, 0
    %v51 = vsel %vm25, %v23, 0
    %v54 = vsel %vm25, %v24, 0
    %56 = vmatprep.subr.mxu0 0.0
    %57 = vmatpush1.xpose.msra.mxu0 %v33
    %58 = vmatprep.subr.mxu0 0.0
    %59 = vmatpush1.xpose.msra.mxu0 %v36
    %60 = vmatprep.subr.mxu0 0.0
    %61 = vmatpush1.xpose.msra.mxu0 %v39
    %62 = vmatprep.subr.mxu0 0.0
    %63 = vmatpush1.xpose.msra.mxu0 %v42
    %64 = vmatprep.subr.mxu0 0.0
    %65 = vmatpush1.xpose.msra.mxu0 %v45
    %66 = vmatprep.subr.mxu0 0.0
    %67 = vmatpush1.xpose.msra.mxu0 %v48
    %68 = vmatprep.subr.mxu0 0.0
    %69 = vmatpush1.xpose.msra.mxu0 %v51
    %70 = vmatprep.subr.mxu0 0.0
    %71 = vmatpush1.xpose.msra.mxu0 %v54
    %72 = vmatprep.subr.mxu0 0.0
    %73 = vmatpush1.xpose.msra.mxu0 0.0
    %74 = vmatprep.subr.mxu0 0.0
    %75 = vmatpush1.xpose.msra.mxu0 0.0
    %76 = vmatprep.subr.mxu0 0.0
    %77 = vmatpush1.xpose.msra.mxu0 0.0
    %78 = vmatprep.subr.mxu0 0.0
    %79 = vmatpush1.xpose.msra.mxu0 0.0
    %80 = vmatprep.subr.mxu0 0.0
    %81 = vmatpush1.xpose.msra.mxu0 0.0
    %82 = vmatprep.subr.mxu0 0.0
    %83 = vmatpush1.xpose.msra.mxu0 0.0
    %84 = vmatprep.subr.mxu0 0.0
    %85 = vmatpush1.xpose.msra.mxu0 0.0
    %86 = vmatprep.subr.mxu0 0.0
    %87 = vmatpush1.xpose.msra.mxu0 0.0
    %88 = vmatprep.subr.mxu0 0.0
    %89 = vmatpush1.xpose.msra.mxu0 0.0
    %90 = vmatprep.subr.mxu0 0.0
    %91 = vmatpush1.xpose.msra.mxu0 0.0
    %92 = vmatprep.subr.mxu0 0.0
    %93 = vmatpush1.xpose.msra.mxu0 0.0
    %94 = vmatprep.subr.mxu0 0.0
    %95 = vmatpush1.xpose.msra.mxu0 0.0
    %96 = vmatprep.subr.mxu0 0.0
    %97 = vmatpush1.xpose.msra.mxu0 0.0
    %98 = vmatprep.subr.mxu0 0.0
    %99 = vmatpush1.xpose.msra.mxu0 0.0
    %100 = vmatprep.subr.mxu0 0.0
    %101 = vmatpush1.xpose.msra.mxu0 0.0
    %102 = vmatprep.subr.mxu0 0.0
    %103 = vmatpush1.xpose.msra.mxu0 0.0
    %104 = vmatprep.subr.mxu0 0.0
    %105 = vmatpush1.xpose.msra.mxu0 0.0
    %106 = vmatprep.subr.mxu0 0.0
    %107 = vmatpush1.xpose.msra.mxu0 0.0
    %108 = vmatprep.subr.mxu0 0.0
    %109 = vmatpush1.xpose.msra.mxu0 0.0
    %110 = vmatprep.subr.mxu0 0.0
    %111 = vmatpush1.xpose.msra.mxu0 0.0
    %112 = vmatprep.subr.mxu0 0.0
    %113 = vmatpush1.xpose.msra.mxu0 0.0
    %114 = vmatprep.subr.mxu0 0.0
    %115 = vmatpush1.xpose.msra.mxu0 0.0
    %116 = vmatprep.subr.mxu0 0.0
    %117 = vmatpush1.xpose.msra.mxu0 0.0
    %118 = vmatprep.subr.mxu0 0.0
    %119 = vmatpush1.xpose.msra.mxu0 0.0
    %120 = vmatprep.mubr.f32.mxu0 0.0
    %121 = vmatmul.mubr.f32.gmra.mrb[0].mxu0 %v27
    %v122 = vpop.f32.mrb[0].mxu0
    %v123 = vadd.f32 0.0, %v122
    %v124 = vpop.f32.mrb[0].mxu0
    %125 = vmatprep.mubr.f32.mxu0 0.0
    %126 = vmatmul.mubr.f32.gmra.mrb[0].mxu0 %v30
    %v127 = vpop.f32.mrb[0].mxu0
    %v128 = vadd.f32 0.0, %v127
    %v129 = vpop.f32.mrb[0].mxu0
    %130 = vdwg.mxu0
    %v131 = vmul.f32 %v123, 0.25
    %v132 = vmul.f32 %v128, 0.25
    %v133 = vld [vmem:[%s2] sm:$0x1]
    %v135 = vlaneseq
    %v136 = vshrl.u32 %v135, 7
    %v137 = vsub.s32 0, %v136
    %v138 = vrot.slane %v133, %v137
    %v140 = vadd.f32 %v131, %v138
    %v141 = vadd.f32 %v132, %v138
    %vm142 = vcmask 523264
    %143 = vst.msk [vmem:[#allocation2] sm:$0xff] %vm142, %v140
    %144 = vst.msk [vmem:[#allocation2 + $0x8] sm:$0xff] %vm142, %v141
    // Predicated region
    $region14: #{tpu_custom_call.1} parent=1 // pred_check
      _
    $region15: #{tpu_custom_call.1} parent=1 // pred_check_branch
      %146 = sbr.rel (0) target = $region17
    $region16: #{tpu_custom_call.1} parent=1 // pred_region
      %s148 = ssub.s32 256, 256
      %149 = vsyncadd [#allocation3], %s148
      %s150 = sshll.u32 [#allocation2], 4
      %s151 = int_to_ptr.vmem [resolvable:$true] %s150
      %156 = dma.vmem_to_hbm [thread:$0]  %s151, 256, %s3, [#allocation3], 128, 128, 8
    $region17: #{tpu_custom_call.1} parent=1 // pred_fallthru
      _
    // Predicated region
    $region18: #{tpu_custom_call.1} parent=1 // pred_check
      _
    $region19: #{tpu_custom_call.1} parent=1 // pred_check_branch
      %158 = sbr.rel (0) target = $region21
    $region20: #{tpu_custom_call.1} parent=1 // pred_region
      %159 = dma.done [#allocation3], 256
    $region21: #{tpu_custom_call.1} parent=1 // pred_fallthru
      _
    %160 = vsyncpa [#allocation3], 1

</llo_original>
